<compile_context>
chip_gen: v5e
topology: v5e:2x2
jax: 0.10.0
libtpu: 0.0.40
codegen_flags: <defaults>
</compile_context>

<pallas_src>
import jax
import jax.numpy as jnp
from jax.experimental import pallas as pl
from jax.experimental.pallas import tpu as pltpu

EPS = 1e-5   # PyTorch BatchNorm1d default eps
LANE = 128   # padded width for every layer (all layer widths <= 128 here)


# ----------------------------------------------------------------------------- #
# Fused kernel: backbone stand-in + Projector, both views in one invocation.
#   x_ref     : (2B, C*H*W)      bf16   views stacked on the M axis
#   wpool_ref : (C*H*W, 128)     bf16   avg-pool folded into embed weight, padded
#   wstk_ref  : (3, 128, 128)    bf16   [w1 | w2 | w3] zero-padded
#   bn_ref    : (8, 128)         f32    rows: 0=b_emb, 1..3=(b1,g1,be1), 4..6=(b2,g2,be2)
#   out_ref   : (2B, 128)        f32    lane-dense padded output
# ----------------------------------------------------------------------------- #
def fused_ssl_kernel(x_ref, wpool_ref, wstk_ref, bn_ref, out_ref):
    n = x_ref.shape[0] // 2  # rows per view (static)

    # Backbone stand-in: global average pooling is folded into wpool, so this is
    # one bf16 MXU matmul with f32 accumulation.
    emb = (jnp.dot(x_ref[...], wpool_ref[...],
                   preferred_element_type=jnp.float32) + bn_ref[0:1, :])

    def bn_relu(h, gamma, beta):
        # BatchNorm1d training-mode forward with PER-VIEW batch statistics,
        # computed in f32 from static sublane-tile slices.
        def norm(hv):
            mu = jnp.mean(hv, axis=0, keepdims=True)
            var = jnp.mean(jnp.square(hv - mu), axis=0, keepdims=True)
            return (hv - mu) * jax.lax.rsqrt(var + EPS)

        hn = jnp.concatenate([norm(h[:n]), norm(h[n:])], axis=0)
        return jnp.maximum(hn * gamma + beta, 0.0)

    def layer(h, w_idx, prow):
        h = (jnp.dot(h.astype(jnp.bfloat16), wstk_ref[w_idx],
                     preferred_element_type=jnp.float32)
             + bn_ref[prow:prow + 1, :])
        return bn_relu(h, bn_ref[prow + 1:prow + 2, :], bn_ref[prow + 2:prow + 3, :])

    h = layer(emb, 0, 1)          # Linear -> BN -> ReLU
    h = layer(h, 1, 4)            # Linear -> BN -> ReLU
    # Final Linear (bias=False); output is a full 128-lane unmasked store.
    out_ref[...] = jnp.dot(h.astype(jnp.bfloat16), wstk_ref[2],
                           preferred_element_type=jnp.float32)


# ----------------------------------------------------------------------------- #
# Parameter packing (would normally be hoisted to once-per-optimizer-step).
# ----------------------------------------------------------------------------- #
def _prepare_params(backbone_params, projector_params, hw):
    w_emb, b_emb = backbone_params
    w1, b1, g1, be1, w2, b2, g2, be2, w3 = projector_params
    E = w_emb.shape[1]
    P = LANE
    assert max(E, w1.shape[1], w2.shape[1], w3.shape[1]) <= P

    # Fold global average pooling into the embed matmul:
    # row c*HW + s -> w_emb[c] / HW; pad the output width to 128; cast bf16.
    w_pool = jnp.repeat(w_emb, hw, axis=0) / float(hw)               # (C*HW, E)
    w_pool = jnp.pad(w_pool, ((0, 0), (0, P - E))).astype(jnp.bfloat16)

    def pad_w(w):
        return jnp.pad(w, ((0, P - w.shape[0]), (0, P - w.shape[1])))

    w_stack = jnp.stack([pad_w(w1), pad_w(w2), pad_w(w3)],
                        axis=0).astype(jnp.bfloat16)                 # (3, 128, 128)

    def pad_row(v):
        v = v.reshape(1, -1)
        return jnp.pad(v, ((0, 0), (0, P - v.shape[-1])))

    bn_pack = jnp.concatenate(
        [pad_row(b_emb),
         pad_row(b1), pad_row(g1), pad_row(be1),
         pad_row(b2), pad_row(g2), pad_row(be2),
         jnp.zeros((1, P), jnp.float32)],
        axis=0).astype(jnp.float32)                                  # (8, 128)

    return w_pool, w_stack, bn_pack


# ----------------------------------------------------------------------------- #
# Forward wrapper (jitted): SSLMethod.forward with args.multicrop is None
# -> two_views_forward path; returns the two projected embeddings (z1, z2).
# ----------------------------------------------------------------------------- #
def _ssl_forward(x1, x2, backbone_params, projector_params):
    B, C, H, W = x1.shape
    HW = H * W
    CHW = C * HW
    F = projector_params[-1].shape[1]
    P = LANE

    w_pool, w_stack, bn_pack = _prepare_params(backbone_params, projector_params, HW)

    # Views stacked on the M axis -> single kernel invocation, one matmul each.
    x = jnp.concatenate([x1.reshape(B, CHW), x2.reshape(B, CHW)],
                        axis=0).astype(jnp.bfloat16)                 # (2B, CHW)

    vmem = pl.BlockSpec(memory_space=pltpu.MemorySpace.VMEM)
    z = pl.pallas_call(
        fused_ssl_kernel,
        out_shape=jax.ShapeDtypeStruct((2 * B, P), jnp.float32),
        in_specs=[vmem, vmem, vmem, vmem],
        out_specs=vmem,
    )(x, w_pool, w_stack, bn_pack)

    return z[:B, :F], z[B:, :F]


ssl_forward = jax.jit(_ssl_forward)


# ----------------------------------------------------------------------------- #
# Pure-JAX f32 reference (correctness sanity check)
# ----------------------------------------------------------------------------- #
def reference_forward(x1, x2, backbone_params, projector_params):
    w_emb, b_emb = backbone_params
    w1, b1, g1, be1, w2, b2, g2, be2, w3 = projector_params

    def lin_bn_relu(h, w, b, g, be):
        h = h @ w + b
        mu = jnp.mean(h, axis=0, keepdims=True)
        var = jnp.mean((h - mu) ** 2, axis=0, keepdims=True)
        return jnp.maximum((h - mu) / jnp.sqrt(var + EPS) * g + be, 0.0)

    def one_view(x):
        emb = jnp.mean(x.reshape(x.shape[0], x.shape[1], -1), axis=-1) @ w_emb + b_emb
        h = lin_bn_relu(emb, w1, b1, g1, be1)
        h = lin_bn_relu(h, w2, b2, g2, be2)
        return h @ w3

    return one_view(x1), one_view(x2)


# ----------------------------------------------------------------------------- #
# Main
# ----------------------------------------------------------------------------- #
if __name__ == "__main__":
    key = jax.random.PRNGKey(0)
    ks = jax.random.split(key, 16)

    # Small shapes consistent with the module:
    #   two NCHW views, embedding=32, args.mlp = "64-64-32" -> f = [32, 64, 64, 32]
    B, C, H, W = 8, 4, 16, 16
    E, H1, H2, F = 32, 64, 64, 32

    x1 = jax.random.normal(ks[0], (B, C, H, W), jnp.float32)
    x2 = jax.random.normal(ks[1], (B, C, H, W), jnp.float32)

    # Deterministic synthetic parameters, scaled so activations are O(1)
    # (well conditioned w.r.t. BN eps and bf16 rounding).
    w_emb = jax.random.normal(ks[2], (C, E), jnp.float32) * 4.0
    b_emb = jax.random.normal(ks[3], (1, E), jnp.float32) * 0.1

    w1 = jax.random.normal(ks[4], (E, H1), jnp.float32) * 0.3
    b1 = jax.random.normal(ks[5], (1, H1), jnp.float32) * 0.1
    g1 = 1.0 + jax.random.normal(ks[6], (1, H1), jnp.float32) * 0.1
    be1 = jax.random.normal(ks[7], (1, H1), jnp.float32) * 0.1

    w2 = jax.random.normal(ks[8], (H1, H2), jnp.float32) * 0.2
    b2 = jax.random.normal(ks[9], (1, H2), jnp.float32) * 0.1
    g2 = 1.0 + jax.random.normal(ks[10], (1, H2), jnp.float32) * 0.1
    be2 = jax.random.normal(ks[11], (1, H2), jnp.float32) * 0.1

    w3 = jax.random.normal(ks[12], (H2, F), jnp.float32) * 0.2  # final Linear, bias=False

    backbone_params = (w_emb, b_emb)
    projector_params = (w1, b1, g1, be1, w2, b2, g2, be2, w3)

    z1, z2 = ssl_forward(x1, x2, backbone_params, projector_params)
    jax.block_until_ready((z1, z2))

    r1, r2 = reference_forward(x1, x2, backbone_params, projector_params)
    # bf16 matmul operands (f32 accumulation) -> loosened tolerance vs f32 reference.
    assert jnp.allclose(z1, r1, atol=1e-1, rtol=1e-1), float(jnp.max(jnp.abs(z1 - r1)))
    assert jnp.allclose(z2, r2, atol=1e-1, rtol=1e-1), float(jnp.max(jnp.abs(z2 - r2)))

    print("KERNEL_OK")
</pallas_src>

<mosaic_0001>
module attributes {stable_mosaic.version = 11 : i64} {
  func.func @fused_ssl_kernel(%arg0: memref<16x1024xbf16, #tpu.memory_space<vmem>>, %arg1: memref<1024x128xbf16, #tpu.memory_space<vmem>>, %arg2: memref<3x128x128xbf16, #tpu.memory_space<vmem>>, %arg3: memref<8x128xf32, #tpu.memory_space<vmem>>, %arg4: memref<16x128xf32, #tpu.memory_space<vmem>>) attributes {dimension_semantics = [], scalar_prefetch = 0 : i64, scratch_operands = 0 : i64, tpu.core_type = #tpu.core_type<tc>} {
    %c0 = arith.constant 0 : index
    %c0_0 = arith.constant 0 : index
    %0 = vector.load %arg0[%c0, %c0_0] : memref<16x1024xbf16, #tpu.memory_space<vmem>>, vector<16x1024xbf16>
    %c0_1 = arith.constant 0 : index
    %c0_2 = arith.constant 0 : index
    %1 = vector.load %arg1[%c0_1, %c0_2] : memref<1024x128xbf16, #tpu.memory_space<vmem>>, vector<1024x128xbf16>
    %cst = arith.constant dense<0.000000e+00> : vector<16x128xf32>
    %2 = tpu.matmul %0, %1, %cst {dimension_numbers = #tpu.dot_dimension_numbers<[1], [0], [0], [1], [0, 0, 1, 1], [], []>} : vector<16x1024xbf16>, vector<1024x128xbf16>, vector<16x128xf32> -> vector<16x128xf32>
    %c0_3 = arith.constant 0 : index
    %c0_4 = arith.constant 0 : index
    %3 = vector.load %arg3[%c0_3, %c0_4] : memref<8x128xf32, #tpu.memory_space<vmem>>, vector<1x128xf32>
    %4 = vector.broadcast %3 : vector<1x128xf32> to vector<16x128xf32>
    %5 = arith.addf %2, %4 : vector<16x128xf32>
    %6 = arith.truncf %5 : vector<16x128xf32> to vector<16x128xbf16>
    %c0_5 = arith.constant 0 : index
    %c0_6 = arith.constant 0 : index
    %c0_7 = arith.constant 0 : index
    %7 = vector.load %arg2[%c0_5, %c0_6, %c0_7] : memref<3x128x128xbf16, #tpu.memory_space<vmem>>, vector<1x128x128xbf16>
    %8 = vector.shape_cast %7 : vector<1x128x128xbf16> to vector<128x128xbf16>
    %cst_8 = arith.constant dense<0.000000e+00> : vector<16x128xf32>
    %9 = tpu.matmul %6, %8, %cst_8 {dimension_numbers = #tpu.dot_dimension_numbers<[1], [0], [0], [1], [0, 0, 1, 1], [], []>} : vector<16x128xbf16>, vector<128x128xbf16>, vector<16x128xf32> -> vector<16x128xf32>
    %c1 = arith.constant 1 : index
    %c0_9 = arith.constant 0 : index
    %10 = vector.load %arg3[%c1, %c0_9] : memref<8x128xf32, #tpu.memory_space<vmem>>, vector<1x128xf32>
    %11 = vector.broadcast %10 : vector<1x128xf32> to vector<16x128xf32>
    %12 = arith.addf %9, %11 : vector<16x128xf32>
    %c2 = arith.constant 2 : index
    %c0_10 = arith.constant 0 : index
    %13 = vector.load %arg3[%c2, %c0_10] : memref<8x128xf32, #tpu.memory_space<vmem>>, vector<1x128xf32>
    %c3 = arith.constant 3 : index
    %c0_11 = arith.constant 0 : index
    %14 = vector.load %arg3[%c3, %c0_11] : memref<8x128xf32, #tpu.memory_space<vmem>>, vector<1x128xf32>
    %15 = vector.extract_strided_slice %12 {offsets = [0, 0], sizes = [8, 128], strides = [1, 1]} : vector<16x128xf32> to vector<8x128xf32>
    %cst_12 = arith.constant dense<0.000000e+00> : vector<128xf32>
    %16 = vector.multi_reduction <add>, %15, %cst_12 [0] : vector<8x128xf32> to vector<128xf32>
    %17 = vector.shape_cast %16 : vector<128xf32> to vector<1x128xf32>
    %cst_13 = arith.constant 8.000000e+00 : f32
    %18 = vector.broadcast %cst_13 : f32 to vector<1x128xf32>
    %19 = arith.divf %17, %18 : vector<1x128xf32>
    %20 = vector.broadcast %19 : vector<1x128xf32> to vector<8x128xf32>
    %21 = arith.subf %15, %20 : vector<8x128xf32>
    %22 = arith.mulf %21, %21 : vector<8x128xf32>
    %cst_14 = arith.constant dense<0.000000e+00> : vector<128xf32>
    %23 = vector.multi_reduction <add>, %22, %cst_14 [0] : vector<8x128xf32> to vector<128xf32>
    %24 = vector.shape_cast %23 : vector<128xf32> to vector<1x128xf32>
    %cst_15 = arith.constant 8.000000e+00 : f32
    %25 = vector.broadcast %cst_15 : f32 to vector<1x128xf32>
    %26 = arith.divf %24, %25 : vector<1x128xf32>
    %27 = vector.broadcast %19 : vector<1x128xf32> to vector<8x128xf32>
    %28 = arith.subf %15, %27 : vector<8x128xf32>
    %cst_16 = arith.constant 9.99999974E-6 : f32
    %29 = vector.broadcast %cst_16 : f32 to vector<1x128xf32>
    %30 = arith.addf %26, %29 : vector<1x128xf32>
    %31 = math.rsqrt %30 : vector<1x128xf32>
    %32 = vector.broadcast %31 : vector<1x128xf32> to vector<8x128xf32>
    %33 = arith.mulf %28, %32 : vector<8x128xf32>
    %34 = vector.extract_strided_slice %12 {offsets = [8, 0], sizes = [8, 128], strides = [1, 1]} : vector<16x128xf32> to vector<8x128xf32>
    %cst_17 = arith.constant dense<0.000000e+00> : vector<128xf32>
    %35 = vector.multi_reduction <add>, %34, %cst_17 [0] : vector<8x128xf32> to vector<128xf32>
    %36 = vector.shape_cast %35 : vector<128xf32> to vector<1x128xf32>
    %cst_18 = arith.constant 8.000000e+00 : f32
    %37 = vector.broadcast %cst_18 : f32 to vector<1x128xf32>
    %38 = arith.divf %36, %37 : vector<1x128xf32>
    %39 = vector.broadcast %38 : vector<1x128xf32> to vector<8x128xf32>
    %40 = arith.subf %34, %39 : vector<8x128xf32>
    %41 = arith.mulf %40, %40 : vector<8x128xf32>
    %cst_19 = arith.constant dense<0.000000e+00> : vector<128xf32>
    %42 = vector.multi_reduction <add>, %41, %cst_19 [0] : vector<8x128xf32> to vector<128xf32>
    %43 = vector.shape_cast %42 : vector<128xf32> to vector<1x128xf32>
    %cst_20 = arith.constant 8.000000e+00 : f32
    %44 = vector.broadcast %cst_20 : f32 to vector<1x128xf32>
    %45 = arith.divf %43, %44 : vector<1x128xf32>
    %46 = vector.broadcast %38 : vector<1x128xf32> to vector<8x128xf32>
    %47 = arith.subf %34, %46 : vector<8x128xf32>
    %cst_21 = arith.constant 9.99999974E-6 : f32
    %48 = vector.broadcast %cst_21 : f32 to vector<1x128xf32>
    %49 = arith.addf %45, %48 : vector<1x128xf32>
    %50 = math.rsqrt %49 : vector<1x128xf32>
    %51 = vector.broadcast %50 : vector<1x128xf32> to vector<8x128xf32>
    %52 = arith.mulf %47, %51 : vector<8x128xf32>
    %53 = tpu.concatenate %33, %52 in 0 : vector<8x128xf32>, vector<8x128xf32> -> vector<16x128xf32>
    %54 = vector.broadcast %13 : vector<1x128xf32> to vector<16x128xf32>
    %55 = arith.mulf %53, %54 : vector<16x128xf32>
    %56 = vector.broadcast %14 : vector<1x128xf32> to vector<16x128xf32>
    %57 = arith.addf %55, %56 : vector<16x128xf32>
    %cst_22 = arith.constant 0.000000e+00 : f32
    %58 = vector.broadcast %cst_22 : f32 to vector<16x128xf32>
    %59 = arith.maximumf %57, %58 : vector<16x128xf32>
    %60 = arith.truncf %59 : vector<16x128xf32> to vector<16x128xbf16>
    %c1_23 = arith.constant 1 : index
    %c0_24 = arith.constant 0 : index
    %c0_25 = arith.constant 0 : index
    %61 = vector.load %arg2[%c1_23, %c0_24, %c0_25] : memref<3x128x128xbf16, #tpu.memory_space<vmem>>, vector<1x128x128xbf16>
    %62 = vector.shape_cast %61 : vector<1x128x128xbf16> to vector<128x128xbf16>
    %cst_26 = arith.constant dense<0.000000e+00> : vector<16x128xf32>
    %63 = tpu.matmul %60, %62, %cst_26 {dimension_numbers = #tpu.dot_dimension_numbers<[1], [0], [0], [1], [0, 0, 1, 1], [], []>} : vector<16x128xbf16>, vector<128x128xbf16>, vector<16x128xf32> -> vector<16x128xf32>
    %c4 = arith.constant 4 : index
    %c0_27 = arith.constant 0 : index
    %64 = vector.load %arg3[%c4, %c0_27] : memref<8x128xf32, #tpu.memory_space<vmem>>, vector<1x128xf32>
    %65 = vector.broadcast %64 : vector<1x128xf32> to vector<16x128xf32>
    %66 = arith.addf %63, %65 : vector<16x128xf32>
    %c5 = arith.constant 5 : index
    %c0_28 = arith.constant 0 : index
    %67 = vector.load %arg3[%c5, %c0_28] : memref<8x128xf32, #tpu.memory_space<vmem>>, vector<1x128xf32>
    %c6 = arith.constant 6 : index
    %c0_29 = arith.constant 0 : index
    %68 = vector.load %arg3[%c6, %c0_29] : memref<8x128xf32, #tpu.memory_space<vmem>>, vector<1x128xf32>
    %69 = vector.extract_strided_slice %66 {offsets = [0, 0], sizes = [8, 128], strides = [1, 1]} : vector<16x128xf32> to vector<8x128xf32>
    %cst_30 = arith.constant dense<0.000000e+00> : vector<128xf32>
    %70 = vector.multi_reduction <add>, %69, %cst_30 [0] : vector<8x128xf32> to vector<128xf32>
    %71 = vector.shape_cast %70 : vector<128xf32> to vector<1x128xf32>
    %cst_31 = arith.constant 8.000000e+00 : f32
    %72 = vector.broadcast %cst_31 : f32 to vector<1x128xf32>
    %73 = arith.divf %71, %72 : vector<1x128xf32>
    %74 = vector.broadcast %73 : vector<1x128xf32> to vector<8x128xf32>
    %75 = arith.subf %69, %74 : vector<8x128xf32>
    %76 = arith.mulf %75, %75 : vector<8x128xf32>
    %cst_32 = arith.constant dense<0.000000e+00> : vector<128xf32>
    %77 = vector.multi_reduction <add>, %76, %cst_32 [0] : vector<8x128xf32> to vector<128xf32>
    %78 = vector.shape_cast %77 : vector<128xf32> to vector<1x128xf32>
    %cst_33 = arith.constant 8.000000e+00 : f32
    %79 = vector.broadcast %cst_33 : f32 to vector<1x128xf32>
    %80 = arith.divf %78, %79 : vector<1x128xf32>
    %81 = vector.broadcast %73 : vector<1x128xf32> to vector<8x128xf32>
    %82 = arith.subf %69, %81 : vector<8x128xf32>
    %cst_34 = arith.constant 9.99999974E-6 : f32
    %83 = vector.broadcast %cst_34 : f32 to vector<1x128xf32>
    %84 = arith.addf %80, %83 : vector<1x128xf32>
    %85 = math.rsqrt %84 : vector<1x128xf32>
    %86 = vector.broadcast %85 : vector<1x128xf32> to vector<8x128xf32>
    %87 = arith.mulf %82, %86 : vector<8x128xf32>
    %88 = vector.extract_strided_slice %66 {offsets = [8, 0], sizes = [8, 128], strides = [1, 1]} : vector<16x128xf32> to vector<8x128xf32>
    %cst_35 = arith.constant dense<0.000000e+00> : vector<128xf32>
    %89 = vector.multi_reduction <add>, %88, %cst_35 [0] : vector<8x128xf32> to vector<128xf32>
    %90 = vector.shape_cast %89 : vector<128xf32> to vector<1x128xf32>
    %cst_36 = arith.constant 8.000000e+00 : f32
    %91 = vector.broadcast %cst_36 : f32 to vector<1x128xf32>
    %92 = arith.divf %90, %91 : vector<1x128xf32>
    %93 = vector.broadcast %92 : vector<1x128xf32> to vector<8x128xf32>
    %94 = arith.subf %88, %93 : vector<8x128xf32>
    %95 = arith.mulf %94, %94 : vector<8x128xf32>
    %cst_37 = arith.constant dense<0.000000e+00> : vector<128xf32>
    %96 = vector.multi_reduction <add>, %95, %cst_37 [0] : vector<8x128xf32> to vector<128xf32>
    %97 = vector.shape_cast %96 : vector<128xf32> to vector<1x128xf32>
    %cst_38 = arith.constant 8.000000e+00 : f32
    %98 = vector.broadcast %cst_38 : f32 to vector<1x128xf32>
    %99 = arith.divf %97, %98 : vector<1x128xf32>
    %100 = vector.broadcast %92 : vector<1x128xf32> to vector<8x128xf32>
    %101 = arith.subf %88, %100 : vector<8x128xf32>
    %cst_39 = arith.constant 9.99999974E-6 : f32
    %102 = vector.broadcast %cst_39 : f32 to vector<1x128xf32>
    %103 = arith.addf %99, %102 : vector<1x128xf32>
    %104 = math.rsqrt %103 : vector<1x128xf32>
    %105 = vector.broadcast %104 : vector<1x128xf32> to vector<8x128xf32>
    %106 = arith.mulf %101, %105 : vector<8x128xf32>
    %107 = tpu.concatenate %87, %106 in 0 : vector<8x128xf32>, vector<8x128xf32> -> vector<16x128xf32>
    %108 = vector.broadcast %67 : vector<1x128xf32> to vector<16x128xf32>
    %109 = arith.mulf %107, %108 : vector<16x128xf32>
    %110 = vector.broadcast %68 : vector<1x128xf32> to vector<16x128xf32>
    %111 = arith.addf %109, %110 : vector<16x128xf32>
    %cst_40 = arith.constant 0.000000e+00 : f32
    %112 = vector.broadcast %cst_40 : f32 to vector<16x128xf32>
    %113 = arith.maximumf %111, %112 : vector<16x128xf32>
    %114 = arith.truncf %113 : vector<16x128xf32> to vector<16x128xbf16>
    %c2_41 = arith.constant 2 : index
    %c0_42 = arith.constant 0 : index
    %c0_43 = arith.constant 0 : index
    %115 = vector.load %arg2[%c2_41, %c0_42, %c0_43] : memref<3x128x128xbf16, #tpu.memory_space<vmem>>, vector<1x128x128xbf16>
    %116 = vector.shape_cast %115 : vector<1x128x128xbf16> to vector<128x128xbf16>
    %cst_44 = arith.constant dense<0.000000e+00> : vector<16x128xf32>
    %117 = tpu.matmul %114, %116, %cst_44 {dimension_numbers = #tpu.dot_dimension_numbers<[1], [0], [0], [1], [0, 0, 1, 1], [], []>} : vector<16x128xbf16>, vector<128x128xbf16>, vector<16x128xf32> -> vector<16x128xf32>
    %c0_45 = arith.constant 0 : index
    %c0_46 = arith.constant 0 : index
    %118 = vector.load %arg4[%c0_45, %c0_46] : memref<16x128xf32, #tpu.memory_space<vmem>>, vector<16x128xf32>
    tpu.vector_store %arg4[%c0_45, %c0_46], %117 {strides = array<i32>} : memref<16x128xf32, #tpu.memory_space<vmem>>, vector<16x128xf32>,
    return
  }
}

</mosaic_0001>

<llo_original>
// kernel: _ssl_forward.1
$region0: #{_ssl_forward.1}
  #allocation0 [shape = 'u32[]', space=smem, size = 0x4, offset = 0x4, fixed_abs, tag = 'smem constant byte address 0x4 - core index']
  #allocation1 [shape = 'u32[72,128]{1,0:T(1,128)}', space=vmem, size = 0x9000, scoped, tag = 'internal scratch']
  %s0 = inlined_call_operand.vmem [shape: bf16[16,1024], index: 0, kind: input, shape index: {}]
  %s1 = inlined_call_operand.vmem [shape: bf16[1024,128], index: 1, kind: input, shape index: {}]
  %s2 = inlined_call_operand.vmem [shape: bf16[3,128,128], index: 2, kind: input, shape index: {}]
  %s3 = inlined_call_operand.vmem [shape: f32[8,128], index: 3, kind: input, shape index: {}]
  %s4 = inlined_call_operand.vmem [shape: f32[16,128], index: 4, kind: output, shape index: {}]
  %s5 = sld [smem:[#allocation0]]
  $region26: #{_ssl_forward.1} parent=0
    _
  %s7 = ssub.s32 1, %s5
  %s8 = scalar_select 0, %s7, %s5
  // Predicated region
  $region2: #{_ssl_forward.1} parent=0 // pred_check
    _
  $region3: #{_ssl_forward.1} parent=0 // pred_check_branch
    %10 = sbr.rel (0) target = $region5
  $region4: #{_ssl_forward.1} parent=0 // pred_region
    _
  $region5: #{_ssl_forward.1} parent=0 // pred_fallthru
    _
  // Predicated region
  $region6: #{_ssl_forward.1} parent=0 // pred_check
    _
  $region7: #{_ssl_forward.1} parent=0 // pred_check_branch
    %12 = sbr.rel (0) target = $region9
  $region8: #{_ssl_forward.1} parent=0 // pred_region
    _
  $region9: #{_ssl_forward.1} parent=0 // pred_fallthru
    _
  // Predicated region
  $region10: #{_ssl_forward.1} parent=0 // pred_check
    _
  $region11: #{_ssl_forward.1} parent=0 // pred_check_branch
    %14 = sbr.rel (0) target = $region13
  $region12: #{_ssl_forward.1} parent=0 // pred_region
    _
  $region13: #{_ssl_forward.1} parent=0 // pred_fallthru
    _
  // Predicated region
  $region14: #{_ssl_forward.1} parent=0 // pred_check
    _
  $region15: #{_ssl_forward.1} parent=0 // pred_check_branch
    %16 = sbr.rel (0) target = $region17
  $region16: #{_ssl_forward.1} parent=0 // pred_region
    _
  $region17: #{_ssl_forward.1} parent=0 // pred_fallthru
    _
  %v17 = vld [vmem:[%s0] sm:$0xff]
  %v18 = vld [vmem:[%s0 + $0x8] sm:$0xff]
  %v19 = vld [vmem:[%s0 + $0x10] sm:$0xff]
  %v20 = vld [vmem:[%s0 + $0x18] sm:$0xff]
  %v21 = vld [vmem:[%s0 + $0x20] sm:$0xff]
  %v22 = vld [vmem:[%s0 + $0x28] sm:$0xff]
  %v23 = vld [vmem:[%s0 + $0x30] sm:$0xff]
  %v24 = vld [vmem:[%s0 + $0x38] sm:$0xff]
  %v25 = vld [vmem:[%s1] sm:$0xf]
  %v26 = vld [vmem:[%s1 + $0x4] sm:$0xf]
  %v27 = vld [vmem:[%s1 + $0x8] sm:$0xf]
  %v28 = vld [vmem:[%s1 + $0xc] sm:$0xf]
  %v29 = vld [vmem:[%s1 + $0x10] sm:$0xf]
  %v30 = vld [vmem:[%s1 + $0x14] sm:$0xf]
  %v31 = vld [vmem:[%s1 + $0x18] sm:$0xf]
  %v32 = vld [vmem:[%s1 + $0x1c] sm:$0xf]
  %v33 = vld [vmem:[%s1 + $0x20] sm:$0xf]
  %v34 = vld [vmem:[%s1 + $0x24] sm:$0xf]
  %v35 = vld [vmem:[%s1 + $0x28] sm:$0xf]
  %v36 = vld [vmem:[%s1 + $0x2c] sm:$0xf]
  %v37 = vld [vmem:[%s1 + $0x30] sm:$0xf]
  %v38 = vld [vmem:[%s1 + $0x34] sm:$0xf]
  %v39 = vld [vmem:[%s1 + $0x38] sm:$0xf]
  %v40 = vld [vmem:[%s1 + $0x3c] sm:$0xf]
  %v41 = vld [vmem:[%s1 + $0x40] sm:$0xf]
  %v42 = vld [vmem:[%s1 + $0x44] sm:$0xf]
  %v43 = vld [vmem:[%s1 + $0x48] sm:$0xf]
  %v44 = vld [vmem:[%s1 + $0x4c] sm:$0xf]
  %v45 = vld [vmem:[%s1 + $0x50] sm:$0xf]
  %v46 = vld [vmem:[%s1 + $0x54] sm:$0xf]
  %v47 = vld [vmem:[%s1 + $0x58] sm:$0xf]
  %v48 = vld [vmem:[%s1 + $0x5c] sm:$0xf]
  %v49 = vld [vmem:[%s1 + $0x60] sm:$0xf]
  %v50 = vld [vmem:[%s1 + $0x64] sm:$0xf]
  %v51 = vld [vmem:[%s1 + $0x68] sm:$0xf]
  %v52 = vld [vmem:[%s1 + $0x6c] sm:$0xf]
  %v53 = vld [vmem:[%s1 + $0x70] sm:$0xf]
  %v54 = vld [vmem:[%s1 + $0x74] sm:$0xf]
  %v55 = vld [vmem:[%s1 + $0x78] sm:$0xf]
  %v56 = vld [vmem:[%s1 + $0x7c] sm:$0xf]
  %v57 = vld [vmem:[%s1 + $0x80] sm:$0xf]
  %v58 = vld [vmem:[%s1 + $0x84] sm:$0xf]
  %v59 = vld [vmem:[%s1 + $0x88] sm:$0xf]
  %v60 = vld [vmem:[%s1 + $0x8c] sm:$0xf]
  %v61 = vld [vmem:[%s1 + $0x90] sm:$0xf]
  %v62 = vld [vmem:[%s1 + $0x94] sm:$0xf]
  %v63 = vld [vmem:[%s1 + $0x98] sm:$0xf]
  %v64 = vld [vmem:[%s1 + $0x9c] sm:$0xf]
  %v65 = vld [vmem:[%s1 + $0xa0] sm:$0xf]
  %v66 = vld [vmem:[%s1 + $0xa4] sm:$0xf]
  %v67 = vld [vmem:[%s1 + $0xa8] sm:$0xf]
  %v68 = vld [vmem:[%s1 + $0xac] sm:$0xf]
  %v69 = vld [vmem:[%s1 + $0xb0] sm:$0xf]
  %v70 = vld [vmem:[%s1 + $0xb4] sm:$0xf]
  %v71 = vld [vmem:[%s1 + $0xb8] sm:$0xf]
  %v72 = vld [vmem:[%s1 + $0xbc] sm:$0xf]
  %v73 = vld [vmem:[%s1 + $0xc0] sm:$0xf]
  %v74 = vld [vmem:[%s1 + $0xc4] sm:$0xf]
  %v75 = vld [vmem:[%s1 + $0xc8] sm:$0xf]
  %v76 = vld [vmem:[%s1 + $0xcc] sm:$0xf]
  %v77 = vld [vmem:[%s1 + $0xd0] sm:$0xf]
  %v78 = vld [vmem:[%s1 + $0xd4] sm:$0xf]
  %v79 = vld [vmem:[%s1 + $0xd8] sm:$0xf]
  %v80 = vld [vmem:[%s1 + $0xdc] sm:$0xf]
  %v81 = vld [vmem:[%s1 + $0xe0] sm:$0xf]
  %v82 = vld [vmem:[%s1 + $0xe4] sm:$0xf]
  %v83 = vld [vmem:[%s1 + $0xe8] sm:$0xf]
  %v84 = vld [vmem:[%s1 + $0xec] sm:$0xf]
  %v85 = vld [vmem:[%s1 + $0xf0] sm:$0xf]
  %v86 = vld [vmem:[%s1 + $0xf4] sm:$0xf]
  %v87 = vld [vmem:[%s1 + $0xf8] sm:$0xf]
  %v88 = vld [vmem:[%s1 + $0xfc] sm:$0xf]
  %v89 = vld [vmem:[%s1 + $0x100] sm:$0xf]
  %v90 = vld [vmem:[%s1 + $0x104] sm:$0xf]
  %v91 = vld [vmem:[%s1 + $0x108] sm:$0xf]
  %v92 = vld [vmem:[%s1 + $0x10c] sm:$0xf]
  %v93 = vld [vmem:[%s1 + $0x110] sm:$0xf]
  %v94 = vld [vmem:[%s1 + $0x114] sm:$0xf]
  %v95 = vld [vmem:[%s1 + $0x118] sm:$0xf]
  %v96 = vld [vmem:[%s1 + $0x11c] sm:$0xf]
  %v97 = vld [vmem:[%s1 + $0x120] sm:$0xf]
  %v98 = vld [vmem:[%s1 + $0x124] sm:$0xf]
  %v99 = vld [vmem:[%s1 + $0x128] sm:$0xf]
  %v100 = vld [vmem:[%s1 + $0x12c] sm:$0xf]
  %v101 = vld [vmem:[%s1 + $0x130] sm:$0xf]
  %v102 = vld [vmem:[%s1 + $0x134] sm:$0xf]
  %v103 = vld [vmem:[%s1 + $0x138] sm:$0xf]
  %v104 = vld [vmem:[%s1 + $0x13c] sm:$0xf]
  %v105 = vld [vmem:[%s1 + $0x140] sm:$0xf]
  %v106 = vld [vmem:[%s1 + $0x144] sm:$0xf]
  %v107 = vld [vmem:[%s1 + $0x148] sm:$0xf]
  %v108 = vld [vmem:[%s1 + $0x14c] sm:$0xf]
  %v109 = vld [vmem:[%s1 + $0x150] sm:$0xf]
  %v110 = vld [vmem:[%s1 + $0x154] sm:$0xf]
  %v111 = vld [vmem:[%s1 + $0x158] sm:$0xf]
  %v112 = vld [vmem:[%s1 + $0x15c] sm:$0xf]
  %v113 = vld [vmem:[%s1 + $0x160] sm:$0xf]
  %v114 = vld [vmem:[%s1 + $0x164] sm:$0xf]
  %v115 = vld [vmem:[%s1 + $0x168] sm:$0xf]
  %v116 = vld [vmem:[%s1 + $0x16c] sm:$0xf]
  %v117 = vld [vmem:[%s1 + $0x170] sm:$0xf]
  %v118 = vld [vmem:[%s1 + $0x174] sm:$0xf]
  %v119 = vld [vmem:[%s1 + $0x178] sm:$0xf]
  %v120 = vld [vmem:[%s1 + $0x17c] sm:$0xf]
  %v121 = vld [vmem:[%s1 + $0x180] sm:$0xf]
  %v122 = vld [vmem:[%s1 + $0x184] sm:$0xf]
  %v123 = vld [vmem:[%s1 + $0x188] sm:$0xf]
  %v124 = vld [vmem:[%s1 + $0x18c] sm:$0xf]
  %v125 = vld [vmem:[%s1 + $0x190] sm:$0xf]
  %v126 = vld [vmem:[%s1 + $0x194] sm:$0xf]
  %v127 = vld [vmem:[%s1 + $0x198] sm:$0xf]
  %v128 = vld [vmem:[%s1 + $0x19c] sm:$0xf]
  %v129 = vld [vmem:[%s1 + $0x1a0] sm:$0xf]
  %v130 = vld [vmem:[%s1 + $0x1a4] sm:$0xf]
  %v131 = vld [vmem:[%s1 + $0x1a8] sm:$0xf]
  %v132 = vld [vmem:[%s1 + $0x1ac] sm:$0xf]
  %v133 = vld [vmem:[%s1 + $0x1b0] sm:$0xf]
  %v134 = vld [vmem:[%s1 + $0x1b4] sm:$0xf]
  %v135 = vld [vmem:[%s1 + $0x1b8] sm:$0xf]
  %v136 = vld [vmem:[%s1 + $0x1bc] sm:$0xf]
  %v137 = vld [vmem:[%s1 + $0x1c0] sm:$0xf]
  %v138 = vld [vmem:[%s1 + $0x1c4] sm:$0xf]
  %v139 = vld [vmem:[%s1 + $0x1c8] sm:$0xf]
  %v140 = vld [vmem:[%s1 + $0x1cc] sm:$0xf]
  %v141 = vld [vmem:[%s1 + $0x1d0] sm:$0xf]
  %v142 = vld [vmem:[%s1 + $0x1d4] sm:$0xf]
  %v143 = vld [vmem:[%s1 + $0x1d8] sm:$0xf]
  %v144 = vld [vmem:[%s1 + $0x1dc] sm:$0xf]
  %v145 = vld [vmem:[%s1 + $0x1e0] sm:$0xf]
  %v146 = vld [vmem:[%s1 + $0x1e4] sm:$0xf]
  %v147 = vld [vmem:[%s1 + $0x1e8] sm:$0xf]
  %v148 = vld [vmem:[%s1 + $0x1ec] sm:$0xf]
  %v149 = vld [vmem:[%s1 + $0x1f0] sm:$0xf]
  %v150 = vld [vmem:[%s1 + $0x1f4] sm:$0xf]
  %v151 = vld [vmem:[%s1 + $0x1f8] sm:$0xf]
  %v152 = vld [vmem:[%s1 + $0x1fc] sm:$0xf]
  %v153 = vld [vmem:[%s3] sm:$0x1]
  %v154 = vperm.slane %v153, 0
  %v163 = vunpack.c.l.b16 %v17
  %v164 = vunpack.c.h.b16 %v17
  %v165 = vunpack.c.l.b16 %v18
  %v166 = vunpack.c.h.b16 %v18
  %v167 = vunpack.c.l.b16 %v19
  %v168 = vunpack.c.h.b16 %v19
  %v169 = vunpack.c.l.b16 %v20
  %v170 = vunpack.c.h.b16 %v20
  %v171 = vunpack.c.l.b16 %v21
  %v172 = vunpack.c.h.b16 %v21
  %v173 = vunpack.c.l.b16 %v22
  %v174 = vunpack.c.h.b16 %v22
  %v175 = vunpack.c.l.b16 %v23
  %v176 = vunpack.c.h.b16 %v23
  %v177 = vunpack.c.l.b16 %v24
  %v178 = vunpack.c.h.b16 %v24
  %v179 = vpack.c.b16 %v171, %v163
  %v180 = vpack.c.b16 %v172, %v164
  %v181 = vpack.c.b16 %v173, %v165
  %v182 = vpack.c.b16 %v174, %v166
  %v183 = vpack.c.b16 %v175, %v167
  %v184 = vpack.c.b16 %v176, %v168
  %v185 = vpack.c.b16 %v177, %v169
  %v186 = vpack.c.b16 %v178, %v170
  %v323 = vunpack.c.l.b16 %v25
  %v324 = vunpack.c.l.b16 %v26
  %v325 = vunpack.c.l.b16 %v27
  %v326 = vunpack.c.l.b16 %v28
  %v327 = vunpack.c.l.b16 %v29
  %v328 = vunpack.c.l.b16 %v30
  %v329 = vunpack.c.l.b16 %v31
  %v330 = vunpack.c.l.b16 %v32
  %v331 = vunpack.c.l.b16 %v33
  %v332 = vunpack.c.l.b16 %v34
  %v333 = vunpack.c.l.b16 %v35
  %v334 = vunpack.c.l.b16 %v36
  %v335 = vunpack.c.l.b16 %v37
  %v336 = vunpack.c.l.b16 %v38
  %v337 = vunpack.c.l.b16 %v39
  %v338 = vunpack.c.l.b16 %v40
  %v339 = vunpack.c.l.b16 %v41
  %v340 = vunpack.c.l.b16 %v42
  %v341 = vunpack.c.l.b16 %v43
  %v342 = vunpack.c.l.b16 %v44
  %v343 = vunpack.c.l.b16 %v45
  %v344 = vunpack.c.l.b16 %v46
  %v345 = vunpack.c.l.b16 %v47
  %v346 = vunpack.c.l.b16 %v48
  %v347 = vunpack.c.l.b16 %v49
  %v348 = vunpack.c.l.b16 %v50
  %v349 = vunpack.c.l.b16 %v51
  %v350 = vunpack.c.l.b16 %v52
  %v351 = vunpack.c.l.b16 %v53
  %v352 = vunpack.c.l.b16 %v54
  %v353 = vunpack.c.l.b16 %v55
  %v354 = vunpack.c.l.b16 %v56
  %v355 = vunpack.c.l.b16 %v57
  %v356 = vunpack.c.l.b16 %v58
  %v357 = vunpack.c.l.b16 %v59
  %v358 = vunpack.c.l.b16 %v60
  %v359 = vunpack.c.l.b16 %v61
  %v360 = vunpack.c.l.b16 %v62
  %v361 = vunpack.c.l.b16 %v63
  %v362 = vunpack.c.l.b16 %v64
  %v363 = vunpack.c.l.b16 %v65
  %v364 = vunpack.c.l.b16 %v66
  %v365 = vunpack.c.l.b16 %v67
  %v366 = vunpack.c.l.b16 %v68
  %v367 = vunpack.c.l.b16 %v69
  %v368 = vunpack.c.l.b16 %v70
  %v369 = vunpack.c.l.b16 %v71
  %v370 = vunpack.c.l.b16 %v72
  %v371 = vunpack.c.l.b16 %v73
  %v372 = vunpack.c.l.b16 %v74
  %v373 = vunpack.c.l.b16 %v75
  %v374 = vunpack.c.l.b16 %v76
  %v375 = vunpack.c.l.b16 %v77
  %v376 = vunpack.c.l.b16 %v78
  %v377 = vunpack.c.l.b16 %v79
  %v378 = vunpack.c.l.b16 %v80
  %v379 = vunpack.c.l.b16 %v81
  %v380 = vunpack.c.l.b16 %v82
  %v381 = vunpack.c.l.b16 %v83
  %v382 = vunpack.c.l.b16 %v84
  %v383 = vunpack.c.l.b16 %v85
  %v384 = vunpack.c.l.b16 %v86
  %v385 = vunpack.c.l.b16 %v87
  %v386 = vunpack.c.l.b16 %v88
  %v387 = vunpack.c.l.b16 %v89
  %v388 = vunpack.c.l.b16 %v90
  %v389 = vunpack.c.l.b16 %v91
  %v390 = vunpack.c.l.b16 %v92
  %v391 = vunpack.c.l.b16 %v93
  %v392 = vunpack.c.l.b16 %v94
  %v393 = vunpack.c.l.b16 %v95
  %v394 = vunpack.c.l.b16 %v96
  %v395 = vunpack.c.l.b16 %v97
  %v396 = vunpack.c.l.b16 %v98
  %v397 = vunpack.c.l.b16 %v99
  %v398 = vunpack.c.l.b16 %v100
  %v399 = vunpack.c.l.b16 %v101
  %v400 = vunpack.c.l.b16 %v102
  %v401 = vunpack.c.l.b16 %v103
  %v402 = vunpack.c.l.b16 %v104
  %v403 = vunpack.c.l.b16 %v105
  %v404 = vunpack.c.l.b16 %v106
  %v405 = vunpack.c.l.b16 %v107
  %v406 = vunpack.c.l.b16 %v108
  %v407 = vunpack.c.l.b16 %v109
  %v408 = vunpack.c.l.b16 %v110
  %v409 = vunpack.c.l.b16 %v111
  %v410 = vunpack.c.l.b16 %v112
  %v411 = vunpack.c.l.b16 %v113
  %v412 = vunpack.c.l.b16 %v114
  %v413 = vunpack.c.l.b16 %v115
  %v414 = vunpack.c.l.b16 %v116
  %v415 = vunpack.c.l.b16 %v117
  %v416 = vunpack.c.l.b16 %v118
  %v417 = vunpack.c.l.b16 %v119
  %v418 = vunpack.c.l.b16 %v120
  %v419 = vunpack.c.l.b16 %v121
  %v420 = vunpack.c.l.b16 %v122
  %v421 = vunpack.c.l.b16 %v123
  %v422 = vunpack.c.l.b16 %v124
  %v423 = vunpack.c.l.b16 %v125
  %v424 = vunpack.c.l.b16 %v126
  %v425 = vunpack.c.l.b16 %v127
  %v426 = vunpack.c.l.b16 %v128
  %v427 = vunpack.c.l.b16 %v129
  %v428 = vunpack.c.l.b16 %v130
  %v429 = vunpack.c.l.b16 %v131
  %v430 = vunpack.c.l.b16 %v132
  %v431 = vunpack.c.l.b16 %v133
  %v432 = vunpack.c.l.b16 %v134
  %v433 = vunpack.c.l.b16 %v135
  %v434 = vunpack.c.l.b16 %v136
  %v435 = vunpack.c.l.b16 %v137
  %v436 = vunpack.c.l.b16 %v138
  %v437 = vunpack.c.l.b16 %v139
  %v438 = vunpack.c.l.b16 %v140
  %v439 = vunpack.c.l.b16 %v141
  %v440 = vunpack.c.l.b16 %v142
  %v441 = vunpack.c.l.b16 %v143
  %v442 = vunpack.c.l.b16 %v144
  %v443 = vunpack.c.l.b16 %v145
  %v444 = vunpack.c.l.b16 %v146
  %v445 = vunpack.c.l.b16 %v147
  %v446 = vunpack.c.l.b16 %v148
  %v447 = vunpack.c.l.b16 %v149
  %v448 = vunpack.c.l.b16 %v150
  %v449 = vunpack.c.l.b16 %v151
  %v450 = vunpack.c.l.b16 %v152
  %v451 = vpack.c.b16 %v324, %v323
  %v452 = vpack.c.b16 %v326, %v325
  %v453 = vpack.c.b16 %v328, %v327
  %v454 = vpack.c.b16 %v330, %v329
  %v455 = vpack.c.b16 %v332, %v331
  %v456 = vpack.c.b16 %v334, %v333
  %v457 = vpack.c.b16 %v336, %v335
  %v458 = vpack.c.b16 %v338, %v337
  %v459 = vpack.c.b16 %v340, %v339
  %v460 = vpack.c.b16 %v342, %v341
  %v461 = vpack.c.b16 %v344, %v343
  %v462 = vpack.c.b16 %v346, %v345
  %v463 = vpack.c.b16 %v348, %v347
  %v464 = vpack.c.b16 %v350, %v349
  %v465 = vpack.c.b16 %v352, %v351
  %v466 = vpack.c.b16 %v354, %v353
  %v467 = vpack.c.b16 %v356, %v355
  %v468 = vpack.c.b16 %v358, %v357
  %v469 = vpack.c.b16 %v360, %v359
  %v470 = vpack.c.b16 %v362, %v361
  %v471 = vpack.c.b16 %v364, %v363
  %v472 = vpack.c.b16 %v366, %v365
  %v473 = vpack.c.b16 %v368, %v367
  %v474 = vpack.c.b16 %v370, %v369
  %v475 = vpack.c.b16 %v372, %v371
  %v476 = vpack.c.b16 %v374, %v373
  %v477 = vpack.c.b16 %v376, %v375
  %v478 = vpack.c.b16 %v378, %v377
  %v479 = vpack.c.b16 %v380, %v379
  %v480 = vpack.c.b16 %v382, %v381
  %v481 = vpack.c.b16 %v384, %v383
  %v482 = vpack.c.b16 %v386, %v385
  %v483 = vpack.c.b16 %v388, %v387
  %v484 = vpack.c.b16 %v390, %v389
  %v485 = vpack.c.b16 %v392, %v391
  %v486 = vpack.c.b16 %v394, %v393
  %v487 = vpack.c.b16 %v396, %v395
  %v488 = vpack.c.b16 %v398, %v397
  %v489 = vpack.c.b16 %v400, %v399
  %v490 = vpack.c.b16 %v402, %v401
  %v491 = vpack.c.b16 %v404, %v403
  %v492 = vpack.c.b16 %v406, %v405
  %v493 = vpack.c.b16 %v408, %v407
  %v494 = vpack.c.b16 %v410, %v409
  %v495 = vpack.c.b16 %v412, %v411
  %v496 = vpack.c.b16 %v414, %v413
  %v497 = vpack.c.b16 %v416, %v415
  %v498 = vpack.c.b16 %v418, %v417
  %v499 = vpack.c.b16 %v420, %v419
  %v500 = vpack.c.b16 %v422, %v421
  %v501 = vpack.c.b16 %v424, %v423
  %v502 = vpack.c.b16 %v426, %v425
  %v503 = vpack.c.b16 %v428, %v427
  %v504 = vpack.c.b16 %v430, %v429
  %v505 = vpack.c.b16 %v432, %v431
  %v506 = vpack.c.b16 %v434, %v433
  %v507 = vpack.c.b16 %v436, %v435
  %v508 = vpack.c.b16 %v438, %v437
  %v509 = vpack.c.b16 %v440, %v439
  %v510 = vpack.c.b16 %v442, %v441
  %v511 = vpack.c.b16 %v444, %v443
  %v512 = vpack.c.b16 %v446, %v445
  %v513 = vpack.c.b16 %v448, %v447
  %v514 = vpack.c.b16 %v450, %v449
  %579 = vmatpush.bf16.msra.mxu0 %v458
  %580 = vmatpush.bf16.msra.mxu0 %v457
  %581 = vmatpush.bf16.msra.mxu0 %v456
  %582 = vmatpush.bf16.msra.mxu0 %v455
  %583 = vmatpush.bf16.msra.mxu0 %v454
  %584 = vmatpush.bf16.msra.mxu0 %v453
  %585 = vmatpush.bf16.msra.mxu0 %v452
  %586 = vmatpush.bf16.msra.mxu0 %v451
  %587 = vmatmul.bf16.gmra.mxu0 %v179
  %v588 = vpop.f32.mrf.mxu0
  %v589 = vadd.f32 %v154, %v588
  %v590 = vpop.f32.mrf.mxu0
  %v591 = vadd.f32 %v154, %v590
  %592 = vdwg.mxu0
  %593 = vmatpush.bf16.msra.mxu0 %v466
  %594 = vmatpush.bf16.msra.mxu0 %v465
  %595 = vmatpush.bf16.msra.mxu0 %v464
  %596 = vmatpush.bf16.msra.mxu0 %v463
  %597 = vmatpush.bf16.msra.mxu0 %v462
  %598 = vmatpush.bf16.msra.mxu0 %v461
  %599 = vmatpush.bf16.msra.mxu0 %v460
  %600 = vmatpush.bf16.msra.mxu0 %v459
  %601 = vmatmul.bf16.gmra.mxu0 %v180
  %v602 = vpop.f32.mrf.mxu0
  %v603 = vadd.f32 %v589, %v602
  %v604 = vpop.f32.mrf.mxu0
  %v605 = vadd.f32 %v591, %v604
  %606 = vdwg.mxu0
  %607 = vmatpush.bf16.msra.mxu0 %v474
  %608 = vmatpush.bf16.msra.mxu0 %v473
  %609 = vmatpush.bf16.msra.mxu0 %v472
  %610 = vmatpush.bf16.msra.mxu0 %v471
  %611 = vmatpush.bf16.msra.mxu0 %v470
  %612 = vmatpush.bf16.msra.mxu0 %v469
  %613 = vmatpush.bf16.msra.mxu0 %v468
  %614 = vmatpush.bf16.msra.mxu0 %v467
  %615 = vmatmul.bf16.gmra.mxu0 %v181
  %v616 = vpop.f32.mrf.mxu0
  %v617 = vadd.f32 %v603, %v616
  %v618 = vpop.f32.mrf.mxu0
  %v619 = vadd.f32 %v605, %v618
  %620 = vdwg.mxu0
  %621 = vmatpush.bf16.msra.mxu0 %v482
  %622 = vmatpush.bf16.msra.mxu0 %v481
  %623 = vmatpush.bf16.msra.mxu0 %v480
  %624 = vmatpush.bf16.msra.mxu0 %v479
  %625 = vmatpush.bf16.msra.mxu0 %v478
  %626 = vmatpush.bf16.msra.mxu0 %v477
  %627 = vmatpush.bf16.msra.mxu0 %v476
  %628 = vmatpush.bf16.msra.mxu0 %v475
  %629 = vmatmul.bf16.gmra.mxu0 %v182
  %v630 = vpop.f32.mrf.mxu0
  %v631 = vadd.f32 %v617, %v630
  %v632 = vpop.f32.mrf.mxu0
  %v633 = vadd.f32 %v619, %v632
  %634 = vdwg.mxu0
  %635 = vmatpush.bf16.msra.mxu0 %v490
  %636 = vmatpush.bf16.msra.mxu0 %v489
  %637 = vmatpush.bf16.msra.mxu0 %v488
  %638 = vmatpush.bf16.msra.mxu0 %v487
  %639 = vmatpush.bf16.msra.mxu0 %v486
  %640 = vmatpush.bf16.msra.mxu0 %v485
  %641 = vmatpush.bf16.msra.mxu0 %v484
  %642 = vmatpush.bf16.msra.mxu0 %v483
  %643 = vmatmul.bf16.gmra.mxu0 %v183
  %v644 = vpop.f32.mrf.mxu0
  %v645 = vadd.f32 %v631, %v644
  %v646 = vpop.f32.mrf.mxu0
  %v647 = vadd.f32 %v633, %v646
  %648 = vdwg.mxu0
  %649 = vmatpush.bf16.msra.mxu0 %v498
  %650 = vmatpush.bf16.msra.mxu0 %v497
  %651 = vmatpush.bf16.msra.mxu0 %v496
  %652 = vmatpush.bf16.msra.mxu0 %v495
  %653 = vmatpush.bf16.msra.mxu0 %v494
  %654 = vmatpush.bf16.msra.mxu0 %v493
  %655 = vmatpush.bf16.msra.mxu0 %v492
  %656 = vmatpush.bf16.msra.mxu0 %v491
  %657 = vmatmul.bf16.gmra.mxu0 %v184
  %v658 = vpop.f32.mrf.mxu0
  %v659 = vadd.f32 %v645, %v658
  %v660 = vpop.f32.mrf.mxu0
  %v661 = vadd.f32 %v647, %v660
  %662 = vdwg.mxu0
  %663 = vmatpush.bf16.msra.mxu0 %v506
  %664 = vmatpush.bf16.msra.mxu0 %v505
  %665 = vmatpush.bf16.msra.mxu0 %v504
  %666 = vmatpush.bf16.msra.mxu0 %v503
  %667 = vmatpush.bf16.msra.mxu0 %v502
  %668 = vmatpush.bf16.msra.mxu0 %v501
  %669 = vmatpush.bf16.msra.mxu0 %v500
  %670 = vmatpush.bf16.msra.mxu0 %v499
  %671 = vmatmul.bf16.gmra.mxu0 %v185
  %v672 = vpop.f32.mrf.mxu0
  %v673 = vadd.f32 %v659, %v672
  %v674 = vpop.f32.mrf.mxu0
  %v675 = vadd.f32 %v661, %v674
  %676 = vdwg.mxu0
  %677 = vmatpush.bf16.msra.mxu0 %v514
  %678 = vmatpush.bf16.msra.mxu0 %v513
  %679 = vmatpush.bf16.msra.mxu0 %v512
  %680 = vmatpush.bf16.msra.mxu0 %v511
  %681 = vmatpush.bf16.msra.mxu0 %v510
  %682 = vmatpush.bf16.msra.mxu0 %v509
  %683 = vmatpush.bf16.msra.mxu0 %v508
  %684 = vmatpush.bf16.msra.mxu0 %v507
  %685 = vmatmul.bf16.gmra.mxu0 %v186
  %v686 = vpop.f32.mrf.mxu0
  %v687 = vadd.f32 %v673, %v686
  %v688 = vpop.f32.mrf.mxu0
  %v689 = vadd.f32 %v675, %v688
  %690 = vdwg.mxu0
  %v691 = vpack.c.bf16 %v689, %v687
  %v692 = vld [vmem:[%s2] sm:$0xf]
  %v693 = vld [vmem:[%s2 + $0x4] sm:$0xf]
  %v694 = vld [vmem:[%s2 + $0x8] sm:$0xf]
  %v695 = vld [vmem:[%s2 + $0xc] sm:$0xf]
  %v696 = vld [vmem:[%s2 + $0x10] sm:$0xf]
  %v697 = vld [vmem:[%s2 + $0x14] sm:$0xf]
  %v698 = vld [vmem:[%s2 + $0x18] sm:$0xf]
  %v699 = vld [vmem:[%s2 + $0x1c] sm:$0xf]
  %v700 = vld [vmem:[%s2 + $0x20] sm:$0xf]
  %v701 = vld [vmem:[%s2 + $0x24] sm:$0xf]
  %v702 = vld [vmem:[%s2 + $0x28] sm:$0xf]
  %v703 = vld [vmem:[%s2 + $0x2c] sm:$0xf]
  %v704 = vld [vmem:[%s2 + $0x30] sm:$0xf]
  %v705 = vld [vmem:[%s2 + $0x34] sm:$0xf]
  %v706 = vld [vmem:[%s2 + $0x38] sm:$0xf]
  %v707 = vld [vmem:[%s2 + $0x3c] sm:$0xf]
  %v708 = vld [vmem:[%s3 + $0x1] sm:$0x1]
  %v709 = vperm.slane %v708, 0
  %v726 = vunpack.c.l.b16 %v692
  %v727 = vunpack.c.l.b16 %v693
  %v728 = vunpack.c.l.b16 %v694
  %v729 = vunpack.c.l.b16 %v695
  %v730 = vunpack.c.l.b16 %v696
  %v731 = vunpack.c.l.b16 %v697
  %v732 = vunpack.c.l.b16 %v698
  %v733 = vunpack.c.l.b16 %v699
  %v734 = vunpack.c.l.b16 %v700
  %v735 = vunpack.c.l.b16 %v701
  %v736 = vunpack.c.l.b16 %v702
  %v737 = vunpack.c.l.b16 %v703
  %v738 = vunpack.c.l.b16 %v704
  %v739 = vunpack.c.l.b16 %v705
  %v740 = vunpack.c.l.b16 %v706
  %v741 = vunpack.c.l.b16 %v707
  %v742 = vpack.c.b16 %v727, %v726
  %v743 = vpack.c.b16 %v729, %v728
  %v744 = vpack.c.b16 %v731, %v730
  %v745 = vpack.c.b16 %v733, %v732
  %v746 = vpack.c.b16 %v735, %v734
  %v747 = vpack.c.b16 %v737, %v736
  %v748 = vpack.c.b16 %v739, %v738
  %v749 = vpack.c.b16 %v741, %v740
  %758 = vmatpush.bf16.msra.mxu0 %v749
  %759 = vmatpush.bf16.msra.mxu0 %v748
  %760 = vmatpush.bf16.msra.mxu0 %v747
  %761 = vmatpush.bf16.msra.mxu0 %v746
  %762 = vmatpush.bf16.msra.mxu0 %v745
  %763 = vmatpush.bf16.msra.mxu0 %v744
  %764 = vmatpush.bf16.msra.mxu0 %v743
  %765 = vmatpush.bf16.msra.mxu0 %v742
  %766 = vmatmul.bf16.gmra.mxu0 %v691
  %v767 = vpop.f32.mrf.mxu0
  %v768 = vadd.f32 %v709, %v767
  %v769 = vpop.f32.mrf.mxu0
  %v770 = vadd.f32 %v709, %v769
  %771 = vdwg.mxu0
  %v772 = vld [vmem:[%s3 + $0x2] sm:$0x1]
  %v773 = vld [vmem:[%s3 + $0x3] sm:$0x1]
  %v774 = vrot.slane %v768, 4
  %v775 = vadd.f32 %v768, %v774
  %v776 = vrot.slane %v775, 2
  %v777 = vadd.f32 %v775, %v776
  %v778 = vrot.slane %v777, 1
  %v779 = vadd.f32 %v777, %v778
  %v780 = vrcp.pop 8.0
  %v781 = vmul.f32 8.0, %v780
  %v782 = vsub.f32 1.0, %v781
  %v783 = vmul.f32 %v780, %v782
  %v784 = vadd.f32 %v780, %v783
  %vm785 = vweird.f32 %v780
  %v786 = vsel %vm785, %v780, %v784
  %v787 = vmul.f32 %v779, %v786
  %v788 = vsub.f32 %v768, %v787
  %v789 = vmul.f32 %v788, %v788
  %v790 = vrot.slane %v789, 4
  %v791 = vadd.f32 %v789, %v790
  %v792 = vrot.slane %v791, 2
  %v793 = vadd.f32 %v791, %v792
  %v794 = vrot.slane %v793, 1
  %v795 = vadd.f32 %v793, %v794
  %v796 = vmul.f32 %v795, %v786
  %v797 = vadd.f32 %v796, 1e-05
  %v798 = vrsqrt.pop %v797
  %v799 = vmul.f32 %v798, %v797
  %v800 = vmul.f32 %v799, %v798
  %v801 = vmul.f32 0.5, %v800
  %v802 = vsub.f32 1.5, %v801
  %v803 = vmul.f32 %v798, %v802
  %vm804 = vweird.f32 %v797
  %vm805 = vweird.f32 %v798
  %vm806 = vmor %vm804, %vm805
  %v807 = vsel %vm806, %v798, %v803
  %v808 = vmul.f32 %v788, %v807
  %v809 = vrot.slane %v770, 4
  %v810 = vadd.f32 %v770, %v809
  %v811 = vrot.slane %v810, 2
  %v812 = vadd.f32 %v810, %v811
  %v813 = vrot.slane %v812, 1
  %v814 = vadd.f32 %v812, %v813
  %v815 = vmul.f32 %v814, %v786
  %v816 = vsub.f32 %v770, %v815
  %v817 = vmul.f32 %v816, %v816
  %v818 = vrot.slane %v817, 4
  %v819 = vadd.f32 %v817, %v818
  %v820 = vrot.slane %v819, 2
  %v821 = vadd.f32 %v819, %v820
  %v822 = vrot.slane %v821, 1
  %v823 = vadd.f32 %v821, %v822
  %v824 = vmul.f32 %v823, %v786
  %v825 = vadd.f32 %v824, 1e-05
  %v826 = vrsqrt.pop %v825
  %v827 = vmul.f32 %v826, %v825
  %v828 = vmul.f32 %v827, %v826
  %v829 = vmul.f32 0.5, %v828
  %v830 = vsub.f32 1.5, %v829
  %v831 = vmul.f32 %v826, %v830
  %vm832 = vweird.f32 %v825
  %vm833 = vweird.f32 %v826
  %vm834 = vmor %vm832, %vm833
  %v835 = vsel %vm834, %v826, %v831
  %v836 = vmul.f32 %v816, %v835
  %v837 = vperm.slane %v772, 0
  %v838 = vmul.f32 %v808, %v837
  %v839 = vmul.f32 %v836, %v837
  %v840 = vperm.slane %v773, 0
  %v841 = vadd.f32 %v838, %v840
  %v842 = vadd.f32 %v839, %v840
  %v843 = vmax.f32 %v841, 0.0
  %v844 = vmax.f32 %v842, 0.0
  %v845 = vpack.c.bf16 %v844, %v843
  %s846 = scalar_lea.vmem %s2, 64
  %v847 = vld [vmem:[%s846] sm:$0xf]
  %v848 = vld [vmem:[%s846 + $0x4] sm:$0xf]
  %v849 = vld [vmem:[%s846 + $0x8] sm:$0xf]
  %v850 = vld [vmem:[%s846 + $0xc] sm:$0xf]
  %v851 = vld [vmem:[%s846 + $0x10] sm:$0xf]
  %v852 = vld [vmem:[%s846 + $0x14] sm:$0xf]
  %v853 = vld [vmem:[%s846 + $0x18] sm:$0xf]
  %v854 = vld [vmem:[%s846 + $0x1c] sm:$0xf]
  %v855 = vld [vmem:[%s846 + $0x20] sm:$0xf]
  %v856 = vld [vmem:[%s846 + $0x24] sm:$0xf]
  %v857 = vld [vmem:[%s846 + $0x28] sm:$0xf]
  %v858 = vld [vmem:[%s846 + $0x2c] sm:$0xf]
  %v859 = vld [vmem:[%s846 + $0x30] sm:$0xf]
  %v860 = vld [vmem:[%s846 + $0x34] sm:$0xf]
  %v861 = vld [vmem:[%s846 + $0x38] sm:$0xf]
  %v862 = vld [vmem:[%s846 + $0x3c] sm:$0xf]
  %v863 = vld [vmem:[%s3 + $0x4] sm:$0x1]
  %v864 = vperm.slane %v863, 0
  %v881 = vunpack.c.l.b16 %v847
  %v882 = vunpack.c.l.b16 %v848
  %v883 = vunpack.c.l.b16 %v849
  %v884 = vunpack.c.l.b16 %v850
  %v885 = vunpack.c.l.b16 %v851
  %v886 = vunpack.c.l.b16 %v852
  %v887 = vunpack.c.l.b16 %v853
  %v888 = vunpack.c.l.b16 %v854
  %v889 = vunpack.c.l.b16 %v855
  %v890 = vunpack.c.l.b16 %v856
  %v891 = vunpack.c.l.b16 %v857
  %v892 = vunpack.c.l.b16 %v858
  %v893 = vunpack.c.l.b16 %v859
  %v894 = vunpack.c.l.b16 %v860
  %v895 = vunpack.c.l.b16 %v861
  %v896 = vunpack.c.l.b16 %v862
  %v897 = vpack.c.b16 %v882, %v881
  %v898 = vpack.c.b16 %v884, %v883
  %v899 = vpack.c.b16 %v886, %v885
  %v900 = vpack.c.b16 %v888, %v887
  %v901 = vpack.c.b16 %v890, %v889
  %v902 = vpack.c.b16 %v892, %v891
  %v903 = vpack.c.b16 %v894, %v893
  %v904 = vpack.c.b16 %v896, %v895
  %913 = vmatpush.bf16.msra.mxu0 %v904
  %914 = vmatpush.bf16.msra.mxu0 %v903
  %915 = vmatpush.bf16.msra.mxu0 %v902
  %916 = vmatpush.bf16.msra.mxu0 %v901
  %917 = vmatpush.bf16.msra.mxu0 %v900
  %918 = vmatpush.bf16.msra.mxu0 %v899
  %919 = vmatpush.bf16.msra.mxu0 %v898
  %920 = vmatpush.bf16.msra.mxu0 %v897
  %921 = vmatmul.bf16.gmra.mxu0 %v845
  %v922 = vpop.f32.mrf.mxu0
  %v923 = vadd.f32 %v864, %v922
  %v924 = vpop.f32.mrf.mxu0
  %v925 = vadd.f32 %v864, %v924
  %926 = vdwg.mxu0
  %v927 = vld [vmem:[%s3 + $0x5] sm:$0x1]
  %v928 = vld [vmem:[%s3 + $0x6] sm:$0x1]
  %v929 = vrot.slane %v923, 4
  %v930 = vadd.f32 %v923, %v929
  %v931 = vrot.slane %v930, 2
  %v932 = vadd.f32 %v930, %v931
  %v933 = vrot.slane %v932, 1
  %v934 = vadd.f32 %v932, %v933
  %v935 = vmul.f32 %v934, %v786
  %v936 = vsub.f32 %v923, %v935
  %v937 = vmul.f32 %v936, %v936
  %v938 = vrot.slane %v937, 4
  %v939 = vadd.f32 %v937, %v938
  %v940 = vrot.slane %v939, 2
  %v941 = vadd.f32 %v939, %v940
  %v942 = vrot.slane %v941, 1
  %v943 = vadd.f32 %v941, %v942
  %v944 = vmul.f32 %v943, %v786
  %v945 = vadd.f32 %v944, 1e-05
  %v946 = vrsqrt.pop %v945
  %v947 = vmul.f32 %v946, %v945
  %v948 = vmul.f32 %v947, %v946
  %v949 = vmul.f32 0.5, %v948
  %v950 = vsub.f32 1.5, %v949
  %v951 = vmul.f32 %v946, %v950
  %vm952 = vweird.f32 %v945
  %vm953 = vweird.f32 %v946
  %vm954 = vmor %vm952, %vm953
  %v955 = vsel %vm954, %v946, %v951
  %v956 = vmul.f32 %v936, %v955
  %v957 = vrot.slane %v925, 4
  %v958 = vadd.f32 %v925, %v957
  %v959 = vrot.slane %v958, 2
  %v960 = vadd.f32 %v958, %v959
  %v961 = vrot.slane %v960, 1
  %v962 = vadd.f32 %v960, %v961
  %v963 = vmul.f32 %v962, %v786
  %v964 = vsub.f32 %v925, %v963
  %v965 = vmul.f32 %v964, %v964
  %v966 = vrot.slane %v965, 4
  %v967 = vadd.f32 %v965, %v966
  %v968 = vrot.slane %v967, 2
  %v969 = vadd.f32 %v967, %v968
  %v970 = vrot.slane %v969, 1
  %v971 = vadd.f32 %v969, %v970
  %v972 = vmul.f32 %v971, %v786
  %v973 = vadd.f32 %v972, 1e-05
  %v974 = vrsqrt.pop %v973
  %v975 = vmul.f32 %v974, %v973
  %v976 = vmul.f32 %v975, %v974
  %v977 = vmul.f32 0.5, %v976
  %v978 = vsub.f32 1.5, %v977
  %v979 = vmul.f32 %v974, %v978
  %vm980 = vweird.f32 %v973
  %vm981 = vweird.f32 %v974
  %vm982 = vmor %vm980, %vm981
  %v983 = vsel %vm982, %v974, %v979
  %v984 = vmul.f32 %v964, %v983
  %v985 = vperm.slane %v927, 0
  %v986 = vmul.f32 %v956, %v985
  %v987 = vmul.f32 %v984, %v985
  %v988 = vperm.slane %v928, 0
  %v989 = vadd.f32 %v986, %v988
  %v990 = vadd.f32 %v987, %v988
  %v991 = vmax.f32 %v989, 0.0
  %v992 = vmax.f32 %v990, 0.0
  %v993 = vpack.c.bf16 %v992, %v991
  %s994 = scalar_lea.vmem %s2, 128
  %v995 = vld [vmem:[%s994] sm:$0xf]
  %v996 = vld [vmem:[%s994 + $0x4] sm:$0xf]
  %v997 = vld [vmem:[%s994 + $0x8] sm:$0xf]
  %v998 = vld [vmem:[%s994 + $0xc] sm:$0xf]
  %v999 = vld [vmem:[%s994 + $0x10] sm:$0xf]
  %v1000 = vld [vmem:[%s994 + $0x14] sm:$0xf]
  %v1001 = vld [vmem:[%s994 + $0x18] sm:$0xf]
  %v1002 = vld [vmem:[%s994 + $0x1c] sm:$0xf]
  %v1003 = vld [vmem:[%s994 + $0x20] sm:$0xf]
  %v1004 = vld [vmem:[%s994 + $0x24] sm:$0xf]
  %v1005 = vld [vmem:[%s994 + $0x28] sm:$0xf]
  %v1006 = vld [vmem:[%s994 + $0x2c] sm:$0xf]
  %v1007 = vld [vmem:[%s994 + $0x30] sm:$0xf]
  %v1008 = vld [vmem:[%s994 + $0x34] sm:$0xf]
  %v1009 = vld [vmem:[%s994 + $0x38] sm:$0xf]
  %v1010 = vld [vmem:[%s994 + $0x3c] sm:$0xf]
  %v1027 = vunpack.c.l.b16 %v995
  %v1028 = vunpack.c.l.b16 %v996
  %v1029 = vunpack.c.l.b16 %v997
  %v1030 = vunpack.c.l.b16 %v998
  %v1031 = vunpack.c.l.b16 %v999
  %v1032 = vunpack.c.l.b16 %v1000
  %v1033 = vunpack.c.l.b16 %v1001
  %v1034 = vunpack.c.l.b16 %v1002
  %v1035 = vunpack.c.l.b16 %v1003
  %v1036 = vunpack.c.l.b16 %v1004
  %v1037 = vunpack.c.l.b16 %v1005
  %v1038 = vunpack.c.l.b16 %v1006
  %v1039 = vunpack.c.l.b16 %v1007
  %v1040 = vunpack.c.l.b16 %v1008
  %v1041 = vunpack.c.l.b16 %v1009
  %v1042 = vunpack.c.l.b16 %v1010
  %v1043 = vpack.c.b16 %v1028, %v1027
  %v1044 = vpack.c.b16 %v1030, %v1029
  %v1045 = vpack.c.b16 %v1032, %v1031
  %v1046 = vpack.c.b16 %v1034, %v1033
  %v1047 = vpack.c.b16 %v1036, %v1035
  %v1048 = vpack.c.b16 %v1038, %v1037
  %v1049 = vpack.c.b16 %v1040, %v1039
  %v1050 = vpack.c.b16 %v1042, %v1041
  %1059 = vmatpush.bf16.msra.mxu0 %v1050
  %1060 = vmatpush.bf16.msra.mxu0 %v1049
  %1061 = vmatpush.bf16.msra.mxu0 %v1048
  %1062 = vmatpush.bf16.msra.mxu0 %v1047
  %1063 = vmatpush.bf16.msra.mxu0 %v1046
  %1064 = vmatpush.bf16.msra.mxu0 %v1045
  %1065 = vmatpush.bf16.msra.mxu0 %v1044
  %1066 = vmatpush.bf16.msra.mxu0 %v1043
  %1067 = vmatmul.bf16.gmra.mxu0 %v993
  %v1068 = vpop.f32.mrf.mxu0
  %v1069 = vadd.f32 0.0, %v1068
  %v1070 = vpop.f32.mrf.mxu0
  %v1071 = vadd.f32 0.0, %v1070
  %1072 = vdwg.mxu0
  %1073 = vst [vmem:[%s4] sm:$0xff] %v1069
  %1074 = vst [vmem:[%s4 + $0x8] sm:$0xff] %v1071
  // Predicated region
  $region18: #{_ssl_forward.1} parent=0 // pred_check
    _
  $region19: #{_ssl_forward.1} parent=0 // pred_check_branch
    %1076 = sbr.rel (0) target = $region21
  $region20: #{_ssl_forward.1} parent=0 // pred_region
    _
  $region21: #{_ssl_forward.1} parent=0 // pred_fallthru
    _
  // Predicated region
  $region22: #{_ssl_forward.1} parent=0 // pred_check
    _
  $region23: #{_ssl_forward.1} parent=0 // pred_check_branch
    %1078 = sbr.rel (0) target = $region25
  $region24: #{_ssl_forward.1} parent=0 // pred_region
    _
  $region25: #{_ssl_forward.1} parent=0 // pred_fallthru
    _

</llo_original>
